<compile_context>
chip_gen: v7x
topology: tpu7x:2x2x1
jax: 0.10.0
libtpu: 0.0.40
codegen_flags: <defaults>
</compile_context>

<pallas_src>
import jax
import jax.numpy as jnp
from jax.experimental import pallas as pl
from jax.experimental.pallas import tpu as pltpu

_LANES = 128


# ---------------------------------------------------------------------------
# Helpers
# ---------------------------------------------------------------------------
def _full_spec(shape):
    zeros = (0,) * len(shape)
    return pl.BlockSpec(shape, lambda i, _z=zeros: _z)


# ---------------------------------------------------------------------------
# Fused single-step decoder kernel.
#   inputs : xh    [B, E+H]      (embedded token | previous hidden)
#            ann   [B, NK, K]    (annotations)
#            gru_w [E+H+1, 4H]   (packed GRU gates r|z|i_n|h_n, bias as last row)
#            kv_w  [K+1, 2H]     ([wk | wcv], b_attn folded into last row of the key half)
#            qc_w  [H+1, 2H]     ([wq | wch], combine bias folded into last row)
#            v     [1, H]        (Bahdanau scoring vector)
#            ow    [H+1, O]      (output Linear weight, bias as last row)
#   output : out   [B, out_width] lane-dense slab = [log_softmax | h_t | a_t | 0-pad]
# ---------------------------------------------------------------------------
def _make_fused_step_kernel(E, H, NK, K, O, out_width):
    def kernel(xh_ref, ann_ref, gruw_ref, kvw_ref, qcw_ref, vatt_ref, ow_ref, out_ref):
        f32 = jnp.float32

        def mm(a, b):
            return jnp.dot(a, b, preferred_element_type=f32)

        xh = xh_ref[...]                                   # [B, E+H]
        B = xh.shape[0]
        h_prev = xh[:, E:E + H]                            # previous hidden   [B, H]

        # ---- GRU step: all six gate matmuls in ONE dot (bias folded as last row) ----
        gw = gruw_ref[...]                                 # [E+H+1, 4H]
        gates = mm(xh, gw[0:E + H, :]) + gw[E + H:E + H + 1, :]
        r = jax.nn.sigmoid(gates[:, 0:H])
        z = jax.nn.sigmoid(gates[:, H:2 * H])
        n = jnp.tanh(gates[:, 2 * H:3 * H] + r * gates[:, 3 * H:4 * H])
        h_t = (1.0 - z) * n + z * h_prev                   # [B, H]

        # ---- annotation projections (former precompute, now fused): [Wk@ann+b | Wcv@ann] ----
        ann = ann_ref[...]                                 # [B, NK, K]
        kvw = kvw_ref[...]                                 # [K+1, 2H]
        kvw_b = jnp.broadcast_to(kvw[0:K, :][None], (B, K, 2 * H))
        kv3 = jnp.einsum("bnk,bkh->bnh", ann, kvw_b,
                         preferred_element_type=f32) + kvw[K:K + 1, :]
        kproj = kv3[:, :, 0:H]                             # Wk@ann + b_attn   [B, NK, H]
        vproj = kv3[:, :, H:2 * H]                         # Wcv@ann           [B, NK, H]

        # ---- fused h_t projections: ONE dot -> [Wq@h_t | Wch@h_t + bc] ----
        qcw = qcw_ref[...]                                 # [H+1, 2H]
        qc = mm(h_t, qcw[0:H, :]) + qcw[H:H + 1, :]
        qproj = qc[:, 0:H]
        hcomb = qc[:, H:2 * H]

        # ---- additive (Bahdanau) attention ----
        e = jnp.tanh(kproj + qproj[:, None, :])            # [B, NK, H]
        scores = jnp.sum(e * vatt_ref[...], axis=-1)       # [B, NK]
        m = jnp.max(scores, axis=-1, keepdims=True)
        p = jnp.exp(scores - m)
        a_t = p / jnp.sum(p, axis=-1, keepdims=True)       # softmax over keys

        # context is already Wcv-projected, so attn_combine collapses to an add
        ctx = jnp.sum(a_t[:, :, None] * vproj, axis=1)     # == c_t @ Wcv      [B, H]
        o_t = jnp.maximum(hcomb + ctx, 0.0)                # Linear + ReLU

        # ---- output Linear + log_softmax (computed on un-padded lanes) ----
        ow = ow_ref[...]                                   # [H+1, O]
        out = mm(o_t, ow[0:H, :]) + ow[H:H + 1, :]
        s = out - jnp.max(out, axis=-1, keepdims=True)
        logp = s - jnp.log(jnp.sum(jnp.exp(s), axis=-1, keepdims=True))

        # ---- single unmasked lane-dense store: [logp | h_t | a_t | 0-pad] ----
        pieces = [logp, h_t, a_t]
        pad = out_width - (O + H + NK)
        if pad:
            pieces.append(jnp.zeros((B, pad), f32))
        out_ref[...] = jnp.concatenate(pieces, axis=1)

    return kernel


# ---------------------------------------------------------------------------
# One-time weight packing (hoisted out of the per-step path).
# ---------------------------------------------------------------------------
def pack_params(params):
    f32 = jnp.float32
    emb = params["embedding"].astype(f32)
    E = emb.shape[1]
    wih, whh = params["wih"], params["whh"]
    bih, bhh = params["bih"], params["bhh"]
    H = whh.shape[2]
    K = params["wk"].shape[0]
    assert params["wcv"].shape[0] == K, "packing assumes val_dim == key_dim (V = annotations)"

    # GRU gates block-structured: columns = r | z | i_n | h_n, folded bias as last row.
    gru_w = jnp.zeros((E + H + 1, 4 * H), f32)
    gru_w = gru_w.at[:E, 0 * H:1 * H].set(wih[0]).at[E:E + H, 0 * H:1 * H].set(whh[0])
    gru_w = gru_w.at[:E, 1 * H:2 * H].set(wih[1]).at[E:E + H, 1 * H:2 * H].set(whh[1])
    gru_w = gru_w.at[:E, 2 * H:3 * H].set(wih[2])
    gru_w = gru_w.at[E:E + H, 3 * H:4 * H].set(whh[2])
    gru_w = gru_w.at[E + H, 0 * H:1 * H].set((bih[0] + bhh[0])[0])
    gru_w = gru_w.at[E + H, 1 * H:2 * H].set((bih[1] + bhh[1])[0])
    gru_w = gru_w.at[E + H, 2 * H:3 * H].set(bih[2][0])
    gru_w = gru_w.at[E + H, 3 * H:4 * H].set(bhh[2][0])

    # Annotation projections: [wk | wcv], b_attn folded into last row of the key half.
    kv_w = jnp.zeros((K + 1, 2 * H), f32)
    kv_w = kv_w.at[0:K, 0:H].set(params["wk"]).at[0:K, H:2 * H].set(params["wcv"])
    kv_w = kv_w.at[K, 0:H].set(params["battn"][0])

    # Fused h_t projections: [wq | wch], attn_combine bias folded into last row.
    qc_w = jnp.zeros((H + 1, 2 * H), f32)
    qc_w = qc_w.at[0:H, 0:H].set(params["wq"]).at[0:H, H:2 * H].set(params["wch"])
    qc_w = qc_w.at[H, H:2 * H].set(params["bc"][0])

    # Output Linear with bias as last row.
    ow = jnp.concatenate([params["wo"], params["bo"]], axis=0).astype(f32)

    return {"emb": emb, "gru_w": gru_w, "kv_w": kv_w, "qc_w": qc_w,
            "v": params["v"].astype(f32), "ow": ow}


# ---------------------------------------------------------------------------
# Per-step wrapper: embedding gather + ONE fused pallas_call.
# ---------------------------------------------------------------------------
def _decoder_step(packed, input_ids, hidden, annotations):
    """
    input_ids:   [1, B, 1] int32 token ids
    hidden:      [1, B, H] float32
    annotations: [B, NK, K] float32
    returns (logits [1,B,O], h_t [1,B,H], a_t [B,NK])
    """
    E = packed["emb"].shape[1]
    H = hidden.shape[2]
    B = input_ids.shape[1]
    NK, K = annotations.shape[1], annotations.shape[2]
    O = packed["ow"].shape[1]
    out_width = pl.cdiv(O + H + NK, _LANES) * _LANES

    # glue: embedding lookup; nn.Dropout is identity in eval mode
    x = packed["emb"][input_ids[0, :, 0]]                  # [B, E]
    xh = jnp.concatenate([x, hidden[0]], axis=1)           # [B, E+H]
    ann = annotations.astype(jnp.float32)

    out_slab = pl.pallas_call(
        _make_fused_step_kernel(E, H, NK, K, O, out_width),
        grid=(1,),
        in_specs=[_full_spec(xh.shape),
                  _full_spec(ann.shape),
                  _full_spec(packed["gru_w"].shape),
                  _full_spec(packed["kv_w"].shape),
                  _full_spec(packed["qc_w"].shape),
                  _full_spec(packed["v"].shape),
                  _full_spec(packed["ow"].shape)],
        out_specs=_full_spec((B, out_width)),
        out_shape=jax.ShapeDtypeStruct((B, out_width), jnp.float32),
        compiler_params=pltpu.CompilerParams(dimension_semantics=("arbitrary",)),
    )(xh, ann, packed["gru_w"], packed["kv_w"], packed["qc_w"], packed["v"], packed["ow"])

    logits = out_slab[:, 0:O][None]                        # [1, B, O]
    h_t = out_slab[:, O:O + H][None]                       # [1, B, H]
    a_t = out_slab[:, O + H:O + H + NK]                    # [B, NK]
    return logits, h_t, a_t


attention_decoder_step = jax.jit(_decoder_step)


# ---------------------------------------------------------------------------
# Deterministic parameter init (synthetic; shapes follow the PyTorch module).
# ---------------------------------------------------------------------------
def init_params(key, hid_dim, emb_dim, out_dim, key_dim, val_dim):
    ks = jax.random.split(key, 14)
    s = 0.1
    rnd = lambda k, shp: (jax.random.normal(k, shp, jnp.float32) * s)
    return {
        "embedding": rnd(ks[0], (out_dim, emb_dim)),
        # GRU weights split per-gate (r, z, n) to match torch.nn.GRU semantics
        "wih": rnd(ks[1], (3, emb_dim, hid_dim)),
        "whh": rnd(ks[2], (3, hid_dim, hid_dim)),
        "bih": rnd(ks[3], (3, 1, hid_dim)),
        "bhh": rnd(ks[4], (3, 1, hid_dim)),
        # Additive attention
        "wk": rnd(ks[5], (key_dim, hid_dim)),
        "wq": rnd(ks[6], (hid_dim, hid_dim)),
        "battn": rnd(ks[7], (1, hid_dim)),
        "v": rnd(ks[8], (1, hid_dim)),
        # attn_combine: Linear(hid_dim + val_dim -> hid_dim), split (hidden | context) parts
        "wch": rnd(ks[9], (hid_dim, hid_dim)),
        "wcv": rnd(ks[10], (val_dim, hid_dim)),
        "bc": rnd(ks[11], (1, hid_dim)),
        # output Linear(hid_dim -> out_dim)
        "wo": rnd(ks[12], (hid_dim, out_dim)),
        "bo": rnd(ks[13], (1, out_dim)),
    }


if __name__ == "__main__":
    hid_dim, emb_dim, out_dim, key_dim, val_dim = 32, 32, 64, 32, 32
    batch, n_keys = 4, 8

    key = jax.random.PRNGKey(0)
    kp, ki, ka = jax.random.split(key, 3)
    params = init_params(kp, hid_dim, emb_dim, out_dim, key_dim, val_dim)

    # One-time packing, hoisted out of the per-step path.
    packed = pack_params(params)
    packed = jax.block_until_ready(packed)

    input_ids = jax.random.randint(ki, (1, batch, 1), 0, out_dim, dtype=jnp.int32)
    hidden = jnp.zeros((1, batch, hid_dim), jnp.float32)
    annotations = jax.random.normal(ka, (batch, n_keys, key_dim), jnp.float32)

    logits, h_t, a_t = attention_decoder_step(packed, input_ids, hidden, annotations)
    jax.block_until_ready((logits, h_t, a_t))

    assert logits.shape == (1, batch, out_dim)
    assert h_t.shape == (1, batch, hid_dim)
    assert a_t.shape == (batch, n_keys)
    # log_softmax rows should exponentiate-and-sum to ~1; attention weights sum to ~1
    assert jnp.allclose(jnp.sum(jnp.exp(logits), axis=-1), 1.0, atol=1e-4)
    assert jnp.allclose(jnp.sum(a_t, axis=-1), 1.0, atol=1e-4)

    print("KERNEL_OK")
</pallas_src>

<mosaic_0001>
module attributes {stable_mosaic.version = 11 : i64} {
  func.func @kernel(%arg0: i32, %arg1: memref<4x64xf32, #tpu.memory_space<vmem>>, %arg2: memref<4x8x32xf32, #tpu.memory_space<vmem>>, %arg3: memref<65x128xf32, #tpu.memory_space<vmem>>, %arg4: memref<33x64xf32, #tpu.memory_space<vmem>>, %arg5: memref<33x64xf32, #tpu.memory_space<vmem>>, %arg6: memref<1x32xf32, #tpu.memory_space<vmem>>, %arg7: memref<33x64xf32, #tpu.memory_space<vmem>>, %arg8: memref<4x128xf32, #tpu.memory_space<vmem>>) attributes {dimension_semantics = [#tpu.dimension_semantics<arbitrary>], iteration_bounds = array<i64: 1>, scalar_prefetch = 0 : i64, scratch_operands = 0 : i64, tpu.core_type = #tpu.core_type<tc>, window_params = [{pipeline_mode = #tpu.pipeline_mode<synchronous>, transform_indices = @transform_0, window_bounds = array<i64: 4, 64>}, {pipeline_mode = #tpu.pipeline_mode<synchronous>, transform_indices = @transform_1, window_bounds = array<i64: 4, 8, 32>}, {pipeline_mode = #tpu.pipeline_mode<synchronous>, transform_indices = @transform_2, window_bounds = array<i64: 65, 128>}, {pipeline_mode = #tpu.pipeline_mode<synchronous>, transform_indices = @transform_3, window_bounds = array<i64: 33, 64>}, {pipeline_mode = #tpu.pipeline_mode<synchronous>, transform_indices = @transform_4, window_bounds = array<i64: 33, 64>}, {pipeline_mode = #tpu.pipeline_mode<synchronous>, transform_indices = @transform_5, window_bounds = array<i64: 1, 32>}, {pipeline_mode = #tpu.pipeline_mode<synchronous>, transform_indices = @transform_6, window_bounds = array<i64: 33, 64>}, {pipeline_mode = #tpu.pipeline_mode<synchronous>, transform_indices = @transform_7, window_bounds = array<i64: 4, 128>}]} {
    %c0 = arith.constant 0 : index
    %c0_0 = arith.constant 0 : index
    %0 = vector.load %arg1[%c0, %c0_0] : memref<4x64xf32, #tpu.memory_space<vmem>>, vector<4x64xf32>
    %1 = vector.extract_strided_slice %0 {offsets = [0, 32], sizes = [4, 32], strides = [1, 1]} : vector<4x64xf32> to vector<4x32xf32>
    %c0_1 = arith.constant 0 : index
    %c0_2 = arith.constant 0 : index
    %2 = vector.load %arg3[%c0_1, %c0_2] : memref<65x128xf32, #tpu.memory_space<vmem>>, vector<65x128xf32>
    %3 = vector.extract_strided_slice %2 {offsets = [0, 0], sizes = [64, 128], strides = [1, 1]} : vector<65x128xf32> to vector<64x128xf32>
    %cst = arith.constant dense<0.000000e+00> : vector<4x128xf32>
    %4 = tpu.matmul %0, %3, %cst {dimension_numbers = #tpu.dot_dimension_numbers<[1], [0], [0], [1], [0, 0, 1, 1], [], []>} : vector<4x64xf32>, vector<64x128xf32>, vector<4x128xf32> -> vector<4x128xf32>
    %5 = vector.extract_strided_slice %2 {offsets = [64, 0], sizes = [1, 128], strides = [1, 1]} : vector<65x128xf32> to vector<1x128xf32>
    %6 = vector.broadcast %5 : vector<1x128xf32> to vector<4x128xf32>
    %7 = arith.addf %4, %6 : vector<4x128xf32>
    %8 = vector.extract_strided_slice %7 {offsets = [0, 0], sizes = [4, 32], strides = [1, 1]} : vector<4x128xf32> to vector<4x32xf32>
    %9 = arith.negf %8 : vector<4x32xf32>
    %10 = math.exp %9 : vector<4x32xf32>
    %cst_3 = arith.constant 1.000000e+00 : f32
    %11 = vector.broadcast %cst_3 : f32 to vector<4x32xf32>
    %12 = arith.addf %11, %10 : vector<4x32xf32>
    %13 = arith.divf %11, %12 : vector<4x32xf32>
    %14 = vector.extract_strided_slice %7 {offsets = [0, 32], sizes = [4, 32], strides = [1, 1]} : vector<4x128xf32> to vector<4x32xf32>
    %15 = arith.negf %14 : vector<4x32xf32>
    %16 = math.exp %15 : vector<4x32xf32>
    %cst_4 = arith.constant 1.000000e+00 : f32
    %17 = vector.broadcast %cst_4 : f32 to vector<4x32xf32>
    %18 = arith.addf %17, %16 : vector<4x32xf32>
    %19 = arith.divf %17, %18 : vector<4x32xf32>
    %20 = vector.extract_strided_slice %7 {offsets = [0, 64], sizes = [4, 32], strides = [1, 1]} : vector<4x128xf32> to vector<4x32xf32>
    %21 = vector.extract_strided_slice %7 {offsets = [0, 96], sizes = [4, 32], strides = [1, 1]} : vector<4x128xf32> to vector<4x32xf32>
    %22 = arith.mulf %13, %21 : vector<4x32xf32>
    %23 = arith.addf %20, %22 : vector<4x32xf32>
    %24 = math.tanh %23 : vector<4x32xf32>
    %cst_5 = arith.constant 1.000000e+00 : f32
    %25 = vector.broadcast %cst_5 : f32 to vector<4x32xf32>
    %26 = arith.subf %25, %19 : vector<4x32xf32>
    %27 = arith.mulf %26, %24 : vector<4x32xf32>
    %28 = arith.mulf %19, %1 : vector<4x32xf32>
    %29 = arith.addf %27, %28 : vector<4x32xf32>
    %c0_6 = arith.constant 0 : index
    %c0_7 = arith.constant 0 : index
    %c0_8 = arith.constant 0 : index
    %30 = vector.load %arg2[%c0_6, %c0_7, %c0_8] : memref<4x8x32xf32, #tpu.memory_space<vmem>>, vector<4x8x32xf32>
    %c0_9 = arith.constant 0 : index
    %c0_10 = arith.constant 0 : index
    %31 = vector.load %arg4[%c0_9, %c0_10] : memref<33x64xf32, #tpu.memory_space<vmem>>, vector<33x64xf32>
    %32 = vector.extract_strided_slice %31 {offsets = [0, 0], sizes = [32, 64], strides = [1, 1]} : vector<33x64xf32> to vector<32x64xf32>
    %33 = vector.shape_cast %32 : vector<32x64xf32> to vector<1x32x64xf32>
    %34 = vector.shape_cast %33 : vector<1x32x64xf32> to vector<1x32x64xf32>
    %35 = vector.broadcast %34 : vector<1x32x64xf32> to vector<4x32x64xf32>
    "tpu.trace_start"() <{level = 10 : i32, message = "bnk,bkh->bnh"}> : () -> ()
    %cst_11 = arith.constant dense<0.000000e+00> : vector<4x8x64xf32>
    %36 = tpu.matmul %30, %35, %cst_11 {dimension_numbers = #tpu.dot_dimension_numbers<[2], [1], [1], [2], [0, 0, 0, 1, 1, 2], [0], [0]>} : vector<4x8x32xf32>, vector<4x32x64xf32>, vector<4x8x64xf32> -> vector<4x8x64xf32>
    "tpu.trace_stop"() : () -> ()
    %37 = vector.extract_strided_slice %31 {offsets = [32, 0], sizes = [1, 64], strides = [1, 1]} : vector<33x64xf32> to vector<1x64xf32>
    %38 = vector.shape_cast %37 : vector<1x64xf32> to vector<1x1x64xf32>
    %39 = vector.broadcast %38 : vector<1x1x64xf32> to vector<4x8x64xf32>
    %40 = arith.addf %36, %39 : vector<4x8x64xf32>
    %41 = vector.extract_strided_slice %40 {offsets = [0, 0, 0], sizes = [4, 8, 32], strides = [1, 1, 1]} : vector<4x8x64xf32> to vector<4x8x32xf32>
    %42 = vector.extract_strided_slice %40 {offsets = [0, 0, 32], sizes = [4, 8, 32], strides = [1, 1, 1]} : vector<4x8x64xf32> to vector<4x8x32xf32>
    %c0_12 = arith.constant 0 : index
    %c0_13 = arith.constant 0 : index
    %43 = vector.load %arg5[%c0_12, %c0_13] : memref<33x64xf32, #tpu.memory_space<vmem>>, vector<33x64xf32>
    %44 = vector.extract_strided_slice %43 {offsets = [0, 0], sizes = [32, 64], strides = [1, 1]} : vector<33x64xf32> to vector<32x64xf32>
    %cst_14 = arith.constant dense<0.000000e+00> : vector<4x64xf32>
    %45 = tpu.matmul %29, %44, %cst_14 {dimension_numbers = #tpu.dot_dimension_numbers<[1], [0], [0], [1], [0, 0, 1, 1], [], []>} : vector<4x32xf32>, vector<32x64xf32>, vector<4x64xf32> -> vector<4x64xf32>
    %46 = vector.extract_strided_slice %43 {offsets = [32, 0], sizes = [1, 64], strides = [1, 1]} : vector<33x64xf32> to vector<1x64xf32>
    %47 = vector.broadcast %46 : vector<1x64xf32> to vector<4x64xf32>
    %48 = arith.addf %45, %47 : vector<4x64xf32>
    %49 = vector.extract_strided_slice %48 {offsets = [0, 0], sizes = [4, 32], strides = [1, 1]} : vector<4x64xf32> to vector<4x32xf32>
    %50 = vector.extract_strided_slice %48 {offsets = [0, 32], sizes = [4, 32], strides = [1, 1]} : vector<4x64xf32> to vector<4x32xf32>
    %51 = vector.shape_cast %49 : vector<4x32xf32> to vector<4x1x32xf32>
    %52 = vector.broadcast %51 : vector<4x1x32xf32> to vector<4x8x32xf32>
    %53 = arith.addf %41, %52 : vector<4x8x32xf32>
    %54 = math.tanh %53 : vector<4x8x32xf32>
    %c0_15 = arith.constant 0 : index
    %c0_16 = arith.constant 0 : index
    %55 = vector.load %arg6[%c0_15, %c0_16] : memref<1x32xf32, #tpu.memory_space<vmem>>, vector<1x32xf32>
    %56 = vector.shape_cast %55 : vector<1x32xf32> to vector<1x1x32xf32>
    %57 = vector.broadcast %56 : vector<1x1x32xf32> to vector<4x8x32xf32>
    %58 = arith.mulf %54, %57 : vector<4x8x32xf32>
    %cst_17 = arith.constant dense<0.000000e+00> : vector<4x8xf32>
    %59 = vector.multi_reduction <add>, %58, %cst_17 [2] : vector<4x8x32xf32> to vector<4x8xf32>
    %cst_18 = arith.constant dense<0xFF800000> : vector<4xf32>
    %60 = vector.multi_reduction <maximumf>, %59, %cst_18 [1] : vector<4x8xf32> to vector<4xf32>
    %61 = vector.shape_cast %60 : vector<4xf32> to vector<4x1xf32>
    %62 = vector.broadcast %61 : vector<4x1xf32> to vector<4x8xf32>
    %63 = arith.subf %59, %62 : vector<4x8xf32>
    %64 = math.exp %63 : vector<4x8xf32>
    %cst_19 = arith.constant dense<0.000000e+00> : vector<4xf32>
    %65 = vector.multi_reduction <add>, %64, %cst_19 [1] : vector<4x8xf32> to vector<4xf32>
    %66 = vector.shape_cast %65 : vector<4xf32> to vector<4x1xf32>
    %67 = vector.broadcast %66 : vector<4x1xf32> to vector<4x8xf32>
    %68 = arith.divf %64, %67 : vector<4x8xf32>
    %69 = vector.shape_cast %68 : vector<4x8xf32> to vector<4x8x1xf32>
    %70 = vector.broadcast %69 : vector<4x8x1xf32> to vector<4x8x32xf32>
    %71 = arith.mulf %70, %42 : vector<4x8x32xf32>
    %cst_20 = arith.constant dense<0.000000e+00> : vector<4x32xf32>
    %72 = vector.multi_reduction <add>, %71, %cst_20 [1] : vector<4x8x32xf32> to vector<4x32xf32>
    %73 = arith.addf %50, %72 : vector<4x32xf32>
    %cst_21 = arith.constant 0.000000e+00 : f32
    %74 = vector.broadcast %cst_21 : f32 to vector<4x32xf32>
    %75 = arith.maximumf %73, %74 : vector<4x32xf32>
    %c0_22 = arith.constant 0 : index
    %c0_23 = arith.constant 0 : index
    %76 = vector.load %arg7[%c0_22, %c0_23] : memref<33x64xf32, #tpu.memory_space<vmem>>, vector<33x64xf32>
    %77 = vector.extract_strided_slice %76 {offsets = [0, 0], sizes = [32, 64], strides = [1, 1]} : vector<33x64xf32> to vector<32x64xf32>
    %cst_24 = arith.constant dense<0.000000e+00> : vector<4x64xf32>
    %78 = tpu.matmul %75, %77, %cst_24 {dimension_numbers = #tpu.dot_dimension_numbers<[1], [0], [0], [1], [0, 0, 1, 1], [], []>} : vector<4x32xf32>, vector<32x64xf32>, vector<4x64xf32> -> vector<4x64xf32>
    %79 = vector.extract_strided_slice %76 {offsets = [32, 0], sizes = [1, 64], strides = [1, 1]} : vector<33x64xf32> to vector<1x64xf32>
    %80 = vector.broadcast %79 : vector<1x64xf32> to vector<4x64xf32>
    %81 = arith.addf %78, %80 : vector<4x64xf32>
    %cst_25 = arith.constant dense<0xFF800000> : vector<4xf32>
    %82 = vector.multi_reduction <maximumf>, %81, %cst_25 [1] : vector<4x64xf32> to vector<4xf32>
    %83 = vector.shape_cast %82 : vector<4xf32> to vector<4x1xf32>
    %84 = vector.broadcast %83 : vector<4x1xf32> to vector<4x64xf32>
    %85 = arith.subf %81, %84 : vector<4x64xf32>
    %86 = math.exp %85 : vector<4x64xf32>
    %cst_26 = arith.constant dense<0.000000e+00> : vector<4xf32>
    %87 = vector.multi_reduction <add>, %86, %cst_26 [1] : vector<4x64xf32> to vector<4xf32>
    %88 = vector.shape_cast %87 : vector<4xf32> to vector<4x1xf32>
    %89 = math.log %88 : vector<4x1xf32>
    %90 = vector.broadcast %89 : vector<4x1xf32> to vector<4x64xf32>
    %91 = arith.subf %85, %90 : vector<4x64xf32>
    %cst_27 = arith.constant 0.000000e+00 : f32
    %92 = vector.broadcast %cst_27 : f32 to vector<4x24xf32>
    %93 = tpu.concatenate %91, %29, %68, %92 in 1 : vector<4x64xf32>, vector<4x32xf32>, vector<4x8xf32>, vector<4x24xf32> -> vector<4x128xf32>
    %c0_28 = arith.constant 0 : index
    %c0_29 = arith.constant 0 : index
    %94 = vector.load %arg8[%c0_28, %c0_29] : memref<4x128xf32, #tpu.memory_space<vmem>>, vector<4x128xf32>
    tpu.vector_store %arg8[%c0_28, %c0_29], %93 {strides = array<i32>} : memref<4x128xf32, #tpu.memory_space<vmem>>, vector<4x128xf32>,
    return
  }
  func.func @transform_0(%arg0: i32) -> (i32, i32) {
    %c0_i32 = arith.constant 0 : i32
    %c0_i32_0 = arith.constant 0 : i32
    %c0_i32_1 = arith.constant 0 : i32
    return %c0_i32, %c0_i32_0 : i32, i32
  }
  func.func @transform_1(%arg0: i32) -> (i32, i32, i32) {
    %c0_i32 = arith.constant 0 : i32
    %c0_i32_0 = arith.constant 0 : i32
    %c0_i32_1 = arith.constant 0 : i32
    %c0_i32_2 = arith.constant 0 : i32
    return %c0_i32, %c0_i32_0, %c0_i32_1 : i32, i32, i32
  }
  func.func @transform_2(%arg0: i32) -> (i32, i32) {
    %c0_i32 = arith.constant 0 : i32
    %c0_i32_0 = arith.constant 0 : i32
    %c0_i32_1 = arith.constant 0 : i32
    return %c0_i32, %c0_i32_0 : i32, i32
  }
  func.func @transform_3(%arg0: i32) -> (i32, i32) {
    %c0_i32 = arith.constant 0 : i32
    %c0_i32_0 = arith.constant 0 : i32
    %c0_i32_1 = arith.constant 0 : i32
    return %c0_i32, %c0_i32_0 : i32, i32
  }
  func.func @transform_4(%arg0: i32) -> (i32, i32) {
    %c0_i32 = arith.constant 0 : i32
    %c0_i32_0 = arith.constant 0 : i32
    %c0_i32_1 = arith.constant 0 : i32
    return %c0_i32, %c0_i32_0 : i32, i32
  }
  func.func @transform_5(%arg0: i32) -> (i32, i32) {
    %c0_i32 = arith.constant 0 : i32
    %c0_i32_0 = arith.constant 0 : i32
    %c0_i32_1 = arith.constant 0 : i32
    return %c0_i32, %c0_i32_0 : i32, i32
  }
  func.func @transform_6(%arg0: i32) -> (i32, i32) {
    %c0_i32 = arith.constant 0 : i32
    %c0_i32_0 = arith.constant 0 : i32
    %c0_i32_1 = arith.constant 0 : i32
    return %c0_i32, %c0_i32_0 : i32, i32
  }
  func.func @transform_7(%arg0: i32) -> (i32, i32) {
    %c0_i32 = arith.constant 0 : i32
    %c0_i32_0 = arith.constant 0 : i32
    %c0_i32_1 = arith.constant 0 : i32
    return %c0_i32, %c0_i32_0 : i32, i32
  }
}

</mosaic_0001>

<llo_original>
// kernel: _decoder_step.1
$region0: #{_decoder_step.1}
  #allocation0 [shape = 'u32[]', space=smem, size = 0x4, offset = 0x4, fixed_abs, tag = 'smem constant byte address 0x4 - core index']
  #allocation1 [shape = 'u32[144,128]{1,0:T(1,128)}', space=vmem, size = 0x12000, scoped, tag = 'internal scratch']
  %s0 = inlined_call_operand.vmem [shape: f32[4,64], index: 0, kind: input, shape index: {}]
  %s1 = inlined_call_operand.vmem [shape: f32[4,8,32], index: 1, kind: input, shape index: {}]
  %s2 = inlined_call_operand.vmem [shape: f32[65,128], index: 2, kind: input, shape index: {}]
  %s3 = inlined_call_operand.vmem [shape: f32[33,64], index: 3, kind: input, shape index: {}]
  %s4 = inlined_call_operand.vmem [shape: f32[33,64], index: 4, kind: input, shape index: {}]
  %s5 = inlined_call_operand.hbm [shape: f32[1,32], index: 5, kind: input, shape index: {}]
  %s6 = inlined_call_operand.hbm [shape: f32[33,64], index: 6, kind: input, shape index: {}]
  %s7 = inlined_call_operand.vmem [shape: f32[4,128], index: 7, kind: output, shape index: {}]
  %s8 = sld [smem:[#allocation0]]
  $region46: #{_decoder_step.1} parent=0
    _
  %s10 = ssub.s32 1, %s8
  %s11 = scalar_select 0, %s10, %s8
  $region1: #{_decoder_step.1} parent=0
    #allocation2 [shape = 'u8[512]{0}', space=vmem, size = 0x400, scoped, tag = 'input window, operand 5, single buffered']
    #allocation3 [shape = 's32[1]{0}', space=sflag, size = 0x4, scoped, tag = 'scoped memory for _decoder_step.1']
    #allocation4 [shape = 'u8[20480]{0}', space=vmem, size = 0x5000, scoped, tag = 'input window, operand 6, single buffered']
    #allocation5 [shape = 's32[1]{0}', space=sflag, size = 0x4, scoped, tag = 'scoped memory for _decoder_step.1']
    %12 = vsyncpa [#allocation3], 0
    %13 = vsyncpa [#allocation5], 0
    // Predicated region
    $region2: #{_decoder_step.1} parent=1 // pred_check
      _
    $region3: #{_decoder_step.1} parent=1 // pred_check_branch
      %15 = sbr.rel (0) target = $region5
    $region4: #{_decoder_step.1} parent=1 // pred_region
      _
    $region5: #{_decoder_step.1} parent=1 // pred_fallthru
      _
    // Predicated region
    $region6: #{_decoder_step.1} parent=1 // pred_check
      _
    $region7: #{_decoder_step.1} parent=1 // pred_check_branch
      %17 = sbr.rel (0) target = $region9
    $region8: #{_decoder_step.1} parent=1 // pred_region
      _
    $region9: #{_decoder_step.1} parent=1 // pred_fallthru
      _
    // Predicated region
    $region10: #{_decoder_step.1} parent=1 // pred_check
      _
    $region11: #{_decoder_step.1} parent=1 // pred_check_branch
      %19 = sbr.rel (0) target = $region13
    $region12: #{_decoder_step.1} parent=1 // pred_region
      _
    $region13: #{_decoder_step.1} parent=1 // pred_fallthru
      _
    // Predicated region
    $region14: #{_decoder_step.1} parent=1 // pred_check
      _
    $region15: #{_decoder_step.1} parent=1 // pred_check_branch
      %21 = sbr.rel (0) target = $region17
    $region16: #{_decoder_step.1} parent=1 // pred_region
      _
    $region17: #{_decoder_step.1} parent=1 // pred_fallthru
      _
    // Predicated region
    $region18: #{_decoder_step.1} parent=1 // pred_check
      _
    $region19: #{_decoder_step.1} parent=1 // pred_check_branch
      %23 = sbr.rel (0) target = $region21
    $region20: #{_decoder_step.1} parent=1 // pred_region
      _
    $region21: #{_decoder_step.1} parent=1 // pred_fallthru
      _
    // Predicated region
    $region22: #{_decoder_step.1} parent=1 // pred_check
      _
    $region23: #{_decoder_step.1} parent=1 // pred_check_branch
      %25 = sbr.rel (0) target = $region25
    $region24: #{_decoder_step.1} parent=1 // pred_region
      %s27 = ssub.s32 16, 16
      %28 = vsyncadd [#allocation3], %s27
      %s30 = sshll.u32 [#allocation2], 4
      %s31 = int_to_ptr.vmem [resolvable:$true] %s30
      %33 = dma.hbm_to_vmem [thread:$0]  %s5, 16, %s31, [#allocation3]
    $region25: #{_decoder_step.1} parent=1 // pred_fallthru
      _
    // Predicated region
    $region26: #{_decoder_step.1} parent=1 // pred_check
      _
    $region27: #{_decoder_step.1} parent=1 // pred_check_branch
      %35 = sbr.rel (0) target = $region29
    $region28: #{_decoder_step.1} parent=1 // pred_region
      %s37 = ssub.s32 640, 640
      %38 = vsyncadd [#allocation5], %s37
      %s39 = sshll.u32 [#allocation4], 4
      %s40 = int_to_ptr.vmem [resolvable:$true] %s39
      %45 = dma.hbm_to_vmem [thread:$0]  %s6, 640, %s40, [#allocation5], 128, 128, 8
    $region29: #{_decoder_step.1} parent=1 // pred_fallthru
      _
    // Predicated region
    $region30: #{_decoder_step.1} parent=1 // pred_check
      _
    $region31: #{_decoder_step.1} parent=1 // pred_check_branch
      %47 = sbr.rel (0) target = $region33
    $region32: #{_decoder_step.1} parent=1 // pred_region
      %48 = dma.done [#allocation3], 16
    $region33: #{_decoder_step.1} parent=1 // pred_fallthru
      _
    // Predicated region
    $region34: #{_decoder_step.1} parent=1 // pred_check
      _
    $region35: #{_decoder_step.1} parent=1 // pred_check_branch
      %50 = sbr.rel (0) target = $region37
    $region36: #{_decoder_step.1} parent=1 // pred_region
      %51 = dma.done [#allocation5], 640
    $region37: #{_decoder_step.1} parent=1 // pred_fallthru
      _
    %v52 = vld [vmem:[%s0] sm:$0xf]
    %v53 = vld [vmem:[%s2] sm:$0xff]
    %v54 = vld [vmem:[%s2 + $0x8] sm:$0xff]
    %v55 = vld [vmem:[%s2 + $0x10] sm:$0xff]
    %v56 = vld [vmem:[%s2 + $0x18] sm:$0xff]
    %v57 = vld [vmem:[%s2 + $0x20] sm:$0xff]
    %v58 = vld [vmem:[%s2 + $0x28] sm:$0xff]
    %v59 = vld [vmem:[%s2 + $0x30] sm:$0xff]
    %v60 = vld [vmem:[%s2 + $0x38] sm:$0xff]
    %v61 = vld [vmem:[%s2 + $0x40] sm:$0x1]
    %v62 = vlaneseq
    %v63 = vshrl.u32 %v62, 7
    %v64 = vsub.s32 0, %v63
    %v65 = vrot.slane %v61, %v64
    %vm66 = vcmask 523264
    %v68 = vsel %vm66, %v52, 0
    %70 = vmatprep.subr.mxu0 0.0
    %71 = vmatpush1.msra.mxu0 %v53
    %72 = vmatprep.subr.mxu0 0.0
    %73 = vmatpush1.msra.mxu0 %v54
    %74 = vmatprep.subr.mxu0 0.0
    %75 = vmatpush1.msra.mxu0 %v55
    %76 = vmatprep.subr.mxu0 0.0
    %77 = vmatpush1.msra.mxu0 %v56
    %78 = vmatprep.subr.mxu0 0.0
    %79 = vmatpush1.msra.mxu0 %v57
    %80 = vmatprep.subr.mxu0 0.0
    %81 = vmatpush1.msra.mxu0 %v58
    %82 = vmatprep.subr.mxu0 0.0
    %83 = vmatpush1.msra.mxu0 %v59
    %84 = vmatprep.subr.mxu0 0.0
    %85 = vmatpush1.msra.mxu0 %v60
    %86 = vmatprep.subr.mxu0 0.0
    %87 = vmatpush1.msra.mxu0 0.0
    %88 = vmatprep.subr.mxu0 0.0
    %89 = vmatpush1.msra.mxu0 0.0
    %90 = vmatprep.subr.mxu0 0.0
    %91 = vmatpush1.msra.mxu0 0.0
    %92 = vmatprep.subr.mxu0 0.0
    %93 = vmatpush1.msra.mxu0 0.0
    %94 = vmatprep.subr.mxu0 0.0
    %95 = vmatpush1.msra.mxu0 0.0
    %96 = vmatprep.subr.mxu0 0.0
    %97 = vmatpush1.msra.mxu0 0.0
    %98 = vmatprep.subr.mxu0 0.0
    %99 = vmatpush1.msra.mxu0 0.0
    %100 = vmatprep.subr.mxu0 0.0
    %101 = vmatpush1.msra.mxu0 0.0
    %102 = vmatprep.subr.mxu0 0.0
    %103 = vmatpush1.msra.mxu0 0.0
    %104 = vmatprep.subr.mxu0 0.0
    %105 = vmatpush1.msra.mxu0 0.0
    %106 = vmatprep.subr.mxu0 0.0
    %107 = vmatpush1.msra.mxu0 0.0
    %108 = vmatprep.subr.mxu0 0.0
    %109 = vmatpush1.msra.mxu0 0.0
    %110 = vmatprep.subr.mxu0 0.0
    %111 = vmatpush1.msra.mxu0 0.0
    %112 = vmatprep.subr.mxu0 0.0
    %113 = vmatpush1.msra.mxu0 0.0
    %114 = vmatprep.subr.mxu0 0.0
    %115 = vmatpush1.msra.mxu0 0.0
    %116 = vmatprep.subr.mxu0 0.0
    %117 = vmatpush1.msra.mxu0 0.0
    %118 = vmatprep.subr.mxu0 0.0
    %119 = vmatpush1.msra.mxu0 0.0
    %120 = vmatprep.subr.mxu0 0.0
    %121 = vmatpush1.msra.mxu0 0.0
    %122 = vmatprep.subr.mxu0 0.0
    %123 = vmatpush1.msra.mxu0 0.0
    %124 = vmatprep.subr.mxu0 0.0
    %125 = vmatpush1.msra.mxu0 0.0
    %126 = vmatprep.subr.mxu0 0.0
    %127 = vmatpush1.msra.mxu0 0.0
    %128 = vmatprep.subr.mxu0 0.0
    %129 = vmatpush1.msra.mxu0 0.0
    %130 = vmatprep.subr.mxu0 0.0
    %131 = vmatpush1.msra.mxu0 0.0
    %132 = vmatprep.subr.mxu0 0.0
    %133 = vmatpush1.msra.mxu0 0.0
    %134 = vmatprep.mubr.f32.mxu0 0.0
    %135 = vmatmul.mubr.f32.gmra.mrb[0].mxu0 %v68
    %v136 = vpop.f32.mrb[0].mxu0
    %v137 = vadd.f32 %v65, %v136
    %v138 = vpop.f32.mrb[0].mxu0
    %139 = vdwg.mxu0
    %v140 = vxor.u32 %v137, 2147483648
    %v141 = vmul.f32 %v140, 1.442695
    %v142 = vpow.pop %v141
    %v143 = vadd.f32 %v142, 1.0
    %v144 = vrcp.pop %v143
    %v145 = vmul.f32 1.0, %v144
    %147 = vrot.lane.b32.xlu0 %v137, 32
    %v148 = vpop.permute.xlu0 %147
    %v150 = vmul.f32 %v145, %v148
    %152 = vrot.lane.b32.xlu0 %v150, 64
    %v153 = vpop.permute.xlu0 %152
    %v155 = vadd.f32 %v137, %v153
    %v156 = vtanh.pop %v155
    %v157 = vsub.f32 1.0, %v145
    %159 = vrot.lane.b32.xlu0 %v156, 96
    %v160 = vpop.permute.xlu0 %159
    %v162 = vmul.f32 %v157, %v160
    %v163 = vmul.f32 %v145, %v52
    %v164 = vadd.f32 %v162, %v163
    %v165 = vld [vmem:[%s1] sm:$0xff]
    %v166 = vld [vmem:[%s1 + $0x8] sm:$0xff]
    %v167 = vld [vmem:[%s1 + $0x10] sm:$0xff]
    %v168 = vld [vmem:[%s1 + $0x18] sm:$0xff]
    %v169 = vld [vmem:[%s3] sm:$0xff]
    %v170 = vld [vmem:[%s3 + $0x8] sm:$0xff]
    %v171 = vld [vmem:[%s3 + $0x10] sm:$0xff]
    %v172 = vld [vmem:[%s3 + $0x18] sm:$0xff]
    %v173 = vld [vmem:[%s3 + $0x20] sm:$0x1]
    %v174 = vlaneseq
    %v175 = vshrl.u32 %v174, 7
    %v176 = vsub.s32 0, %v175
    %v177 = vrot.slane %v173, %v176
    %vm178 = vcmask 261120
    %v180 = vsel %vm178, %v165, 0
    %182 = vmatprep.subr.mxu0 0.0
    %183 = vmatpush1.msra.mxu0 %v169
    %184 = vmatprep.subr.mxu0 0.0
    %185 = vmatpush1.msra.mxu0 %v170
    %186 = vmatprep.subr.mxu0 0.0
    %187 = vmatpush1.msra.mxu0 %v171
    %188 = vmatprep.subr.mxu0 0.0
    %189 = vmatpush1.msra.mxu0 %v172
    %190 = vmatprep.subr.mxu0 0.0
    %191 = vmatpush1.msra.mxu0 0.0
    %192 = vmatprep.subr.mxu0 0.0
    %193 = vmatpush1.msra.mxu0 0.0
    %194 = vmatprep.subr.mxu0 0.0
    %195 = vmatpush1.msra.mxu0 0.0
    %196 = vmatprep.subr.mxu0 0.0
    %197 = vmatpush1.msra.mxu0 0.0
    %198 = vmatprep.subr.mxu0 0.0
    %199 = vmatpush1.msra.mxu0 0.0
    %200 = vmatprep.subr.mxu0 0.0
    %201 = vmatpush1.msra.mxu0 0.0
    %202 = vmatprep.subr.mxu0 0.0
    %203 = vmatpush1.msra.mxu0 0.0
    %204 = vmatprep.subr.mxu0 0.0
    %205 = vmatpush1.msra.mxu0 0.0
    %206 = vmatprep.subr.mxu0 0.0
    %207 = vmatpush1.msra.mxu0 0.0
    %208 = vmatprep.subr.mxu0 0.0
    %209 = vmatpush1.msra.mxu0 0.0
    %210 = vmatprep.subr.mxu0 0.0
    %211 = vmatpush1.msra.mxu0 0.0
    %212 = vmatprep.subr.mxu0 0.0
    %213 = vmatpush1.msra.mxu0 0.0
    %214 = vmatprep.subr.mxu0 0.0
    %215 = vmatpush1.msra.mxu0 0.0
    %216 = vmatprep.subr.mxu0 0.0
    %217 = vmatpush1.msra.mxu0 0.0
    %218 = vmatprep.subr.mxu0 0.0
    %219 = vmatpush1.msra.mxu0 0.0
    %220 = vmatprep.subr.mxu0 0.0
    %221 = vmatpush1.msra.mxu0 0.0
    %222 = vmatprep.subr.mxu0 0.0
    %223 = vmatpush1.msra.mxu0 0.0
    %224 = vmatprep.subr.mxu0 0.0
    %225 = vmatpush1.msra.mxu0 0.0
    %226 = vmatprep.subr.mxu0 0.0
    %227 = vmatpush1.msra.mxu0 0.0
    %228 = vmatprep.subr.mxu0 0.0
    %229 = vmatpush1.msra.mxu0 0.0
    %230 = vmatprep.subr.mxu0 0.0
    %231 = vmatpush1.msra.mxu0 0.0
    %232 = vmatprep.subr.mxu0 0.0
    %233 = vmatpush1.msra.mxu0 0.0
    %234 = vmatprep.subr.mxu0 0.0
    %235 = vmatpush1.msra.mxu0 0.0
    %236 = vmatprep.subr.mxu0 0.0
    %237 = vmatpush1.msra.mxu0 0.0
    %238 = vmatprep.subr.mxu0 0.0
    %239 = vmatpush1.msra.mxu0 0.0
    %240 = vmatprep.subr.mxu0 0.0
    %241 = vmatpush1.msra.mxu0 0.0
    %242 = vmatprep.subr.mxu0 0.0
    %243 = vmatpush1.msra.mxu0 0.0
    %244 = vmatprep.subr.mxu0 0.0
    %245 = vmatpush1.msra.mxu0 0.0
    %246 = vmatprep.mubr.f32.mxu0 0.0
    %247 = vmatmul.mubr.f32.gmra.mrb[0].mxu0 %v180
    %v248 = vpop.f32.mrb[0].mxu0
    %v249 = vadd.f32 %v177, %v248
    %v250 = vpop.f32.mrb[0].mxu0
    %251 = vdwg.mxu0
    %v253 = vsel %vm178, %v166, 0
    %255 = vmatprep.subr.mxu0 0.0
    %256 = vmatpush1.msra.mxu0 %v169
    %257 = vmatprep.subr.mxu0 0.0
    %258 = vmatpush1.msra.mxu0 %v170
    %259 = vmatprep.subr.mxu0 0.0
    %260 = vmatpush1.msra.mxu0 %v171
    %261 = vmatprep.subr.mxu0 0.0
    %262 = vmatpush1.msra.mxu0 %v172
    %263 = vmatprep.subr.mxu0 0.0
    %264 = vmatpush1.msra.mxu0 0.0
    %265 = vmatprep.subr.mxu0 0.0
    %266 = vmatpush1.msra.mxu0 0.0
    %267 = vmatprep.subr.mxu0 0.0
    %268 = vmatpush1.msra.mxu0 0.0
    %269 = vmatprep.subr.mxu0 0.0
    %270 = vmatpush1.msra.mxu0 0.0
    %271 = vmatprep.subr.mxu0 0.0
    %272 = vmatpush1.msra.mxu0 0.0
    %273 = vmatprep.subr.mxu0 0.0
    %274 = vmatpush1.msra.mxu0 0.0
    %275 = vmatprep.subr.mxu0 0.0
    %276 = vmatpush1.msra.mxu0 0.0
    %277 = vmatprep.subr.mxu0 0.0
    %278 = vmatpush1.msra.mxu0 0.0
    %279 = vmatprep.subr.mxu0 0.0
    %280 = vmatpush1.msra.mxu0 0.0
    %281 = vmatprep.subr.mxu0 0.0
    %282 = vmatpush1.msra.mxu0 0.0
    %283 = vmatprep.subr.mxu0 0.0
    %284 = vmatpush1.msra.mxu0 0.0
    %285 = vmatprep.subr.mxu0 0.0
    %286 = vmatpush1.msra.mxu0 0.0
    %287 = vmatprep.subr.mxu0 0.0
    %288 = vmatpush1.msra.mxu0 0.0
    %289 = vmatprep.subr.mxu0 0.0
    %290 = vmatpush1.msra.mxu0 0.0
    %291 = vmatprep.subr.mxu0 0.0
    %292 = vmatpush1.msra.mxu0 0.0
    %293 = vmatprep.subr.mxu0 0.0
    %294 = vmatpush1.msra.mxu0 0.0
    %295 = vmatprep.subr.mxu0 0.0
    %296 = vmatpush1.msra.mxu0 0.0
    %297 = vmatprep.subr.mxu0 0.0
    %298 = vmatpush1.msra.mxu0 0.0
    %299 = vmatprep.subr.mxu0 0.0
    %300 = vmatpush1.msra.mxu0 0.0
    %301 = vmatprep.subr.mxu0 0.0
    %302 = vmatpush1.msra.mxu0 0.0
    %303 = vmatprep.subr.mxu0 0.0
    %304 = vmatpush1.msra.mxu0 0.0
    %305 = vmatprep.subr.mxu0 0.0
    %306 = vmatpush1.msra.mxu0 0.0
    %307 = vmatprep.subr.mxu0 0.0
    %308 = vmatpush1.msra.mxu0 0.0
    %309 = vmatprep.subr.mxu0 0.0
    %310 = vmatpush1.msra.mxu0 0.0
    %311 = vmatprep.subr.mxu0 0.0
    %312 = vmatpush1.msra.mxu0 0.0
    %313 = vmatprep.subr.mxu0 0.0
    %314 = vmatpush1.msra.mxu0 0.0
    %315 = vmatprep.subr.mxu0 0.0
    %316 = vmatpush1.msra.mxu0 0.0
    %317 = vmatprep.subr.mxu0 0.0
    %318 = vmatpush1.msra.mxu0 0.0
    %319 = vmatprep.mubr.f32.mxu0 0.0
    %320 = vmatmul.mubr.f32.gmra.mrb[0].mxu0 %v253
    %v321 = vpop.f32.mrb[0].mxu0
    %v322 = vadd.f32 %v177, %v321
    %v323 = vpop.f32.mrb[0].mxu0
    %324 = vdwg.mxu0
    %v326 = vsel %vm178, %v167, 0
    %328 = vmatprep.subr.mxu0 0.0
    %329 = vmatpush1.msra.mxu0 %v169
    %330 = vmatprep.subr.mxu0 0.0
    %331 = vmatpush1.msra.mxu0 %v170
    %332 = vmatprep.subr.mxu0 0.0
    %333 = vmatpush1.msra.mxu0 %v171
    %334 = vmatprep.subr.mxu0 0.0
    %335 = vmatpush1.msra.mxu0 %v172
    %336 = vmatprep.subr.mxu0 0.0
    %337 = vmatpush1.msra.mxu0 0.0
    %338 = vmatprep.subr.mxu0 0.0
    %339 = vmatpush1.msra.mxu0 0.0
    %340 = vmatprep.subr.mxu0 0.0
    %341 = vmatpush1.msra.mxu0 0.0
    %342 = vmatprep.subr.mxu0 0.0
    %343 = vmatpush1.msra.mxu0 0.0
    %344 = vmatprep.subr.mxu0 0.0
    %345 = vmatpush1.msra.mxu0 0.0
    %346 = vmatprep.subr.mxu0 0.0
    %347 = vmatpush1.msra.mxu0 0.0
    %348 = vmatprep.subr.mxu0 0.0
    %349 = vmatpush1.msra.mxu0 0.0
    %350 = vmatprep.subr.mxu0 0.0
    %351 = vmatpush1.msra.mxu0 0.0
    %352 = vmatprep.subr.mxu0 0.0
    %353 = vmatpush1.msra.mxu0 0.0
    %354 = vmatprep.subr.mxu0 0.0
    %355 = vmatpush1.msra.mxu0 0.0
    %356 = vmatprep.subr.mxu0 0.0
    %357 = vmatpush1.msra.mxu0 0.0
    %358 = vmatprep.subr.mxu0 0.0
    %359 = vmatpush1.msra.mxu0 0.0
    %360 = vmatprep.subr.mxu0 0.0
    %361 = vmatpush1.msra.mxu0 0.0
    %362 = vmatprep.subr.mxu0 0.0
    %363 = vmatpush1.msra.mxu0 0.0
    %364 = vmatprep.subr.mxu0 0.0
    %365 = vmatpush1.msra.mxu0 0.0
    %366 = vmatprep.subr.mxu0 0.0
    %367 = vmatpush1.msra.mxu0 0.0
    %368 = vmatprep.subr.mxu0 0.0
    %369 = vmatpush1.msra.mxu0 0.0
    %370 = vmatprep.subr.mxu0 0.0
    %371 = vmatpush1.msra.mxu0 0.0
    %372 = vmatprep.subr.mxu0 0.0
    %373 = vmatpush1.msra.mxu0 0.0
    %374 = vmatprep.subr.mxu0 0.0
    %375 = vmatpush1.msra.mxu0 0.0
    %376 = vmatprep.subr.mxu0 0.0
    %377 = vmatpush1.msra.mxu0 0.0
    %378 = vmatprep.subr.mxu0 0.0
    %379 = vmatpush1.msra.mxu0 0.0
    %380 = vmatprep.subr.mxu0 0.0
    %381 = vmatpush1.msra.mxu0 0.0
    %382 = vmatprep.subr.mxu0 0.0
    %383 = vmatpush1.msra.mxu0 0.0
    %384 = vmatprep.subr.mxu0 0.0
    %385 = vmatpush1.msra.mxu0 0.0
    %386 = vmatprep.subr.mxu0 0.0
    %387 = vmatpush1.msra.mxu0 0.0
    %388 = vmatprep.subr.mxu0 0.0
    %389 = vmatpush1.msra.mxu0 0.0
    %390 = vmatprep.subr.mxu0 0.0
    %391 = vmatpush1.msra.mxu0 0.0
    %392 = vmatprep.mubr.f32.mxu0 0.0
    %393 = vmatmul.mubr.f32.gmra.mrb[0].mxu0 %v326
    %v394 = vpop.f32.mrb[0].mxu0
    %v395 = vadd.f32 %v177, %v394
    %v396 = vpop.f32.mrb[0].mxu0
    %397 = vdwg.mxu0
    %v399 = vsel %vm178, %v168, 0
    %401 = vmatprep.subr.mxu0 0.0
    %402 = vmatpush1.msra.mxu0 %v169
    %403 = vmatprep.subr.mxu0 0.0
    %404 = vmatpush1.msra.mxu0 %v170
    %405 = vmatprep.subr.mxu0 0.0
    %406 = vmatpush1.msra.mxu0 %v171
    %407 = vmatprep.subr.mxu0 0.0
    %408 = vmatpush1.msra.mxu0 %v172
    %409 = vmatprep.subr.mxu0 0.0
    %410 = vmatpush1.msra.mxu0 0.0
    %411 = vmatprep.subr.mxu0 0.0
    %412 = vmatpush1.msra.mxu0 0.0
    %413 = vmatprep.subr.mxu0 0.0
    %414 = vmatpush1.msra.mxu0 0.0
    %415 = vmatprep.subr.mxu0 0.0
    %416 = vmatpush1.msra.mxu0 0.0
    %417 = vmatprep.subr.mxu0 0.0
    %418 = vmatpush1.msra.mxu0 0.0
    %419 = vmatprep.subr.mxu0 0.0
    %420 = vmatpush1.msra.mxu0 0.0
    %421 = vmatprep.subr.mxu0 0.0
    %422 = vmatpush1.msra.mxu0 0.0
    %423 = vmatprep.subr.mxu0 0.0
    %424 = vmatpush1.msra.mxu0 0.0
    %425 = vmatprep.subr.mxu0 0.0
    %426 = vmatpush1.msra.mxu0 0.0
    %427 = vmatprep.subr.mxu0 0.0
    %428 = vmatpush1.msra.mxu0 0.0
    %429 = vmatprep.subr.mxu0 0.0
    %430 = vmatpush1.msra.mxu0 0.0
    %431 = vmatprep.subr.mxu0 0.0
    %432 = vmatpush1.msra.mxu0 0.0
    %433 = vmatprep.subr.mxu0 0.0
    %434 = vmatpush1.msra.mxu0 0.0
    %435 = vmatprep.subr.mxu0 0.0
    %436 = vmatpush1.msra.mxu0 0.0
    %437 = vmatprep.subr.mxu0 0.0
    %438 = vmatpush1.msra.mxu0 0.0
    %439 = vmatprep.subr.mxu0 0.0
    %440 = vmatpush1.msra.mxu0 0.0
    %441 = vmatprep.subr.mxu0 0.0
    %442 = vmatpush1.msra.mxu0 0.0
    %443 = vmatprep.subr.mxu0 0.0
    %444 = vmatpush1.msra.mxu0 0.0
    %445 = vmatprep.subr.mxu0 0.0
    %446 = vmatpush1.msra.mxu0 0.0
    %447 = vmatprep.subr.mxu0 0.0
    %448 = vmatpush1.msra.mxu0 0.0
    %449 = vmatprep.subr.mxu0 0.0
    %450 = vmatpush1.msra.mxu0 0.0
    %451 = vmatprep.subr.mxu0 0.0
    %452 = vmatpush1.msra.mxu0 0.0
    %453 = vmatprep.subr.mxu0 0.0
    %454 = vmatpush1.msra.mxu0 0.0
    %455 = vmatprep.subr.mxu0 0.0
    %456 = vmatpush1.msra.mxu0 0.0
    %457 = vmatprep.subr.mxu0 0.0
    %458 = vmatpush1.msra.mxu0 0.0
    %459 = vmatprep.subr.mxu0 0.0
    %460 = vmatpush1.msra.mxu0 0.0
    %461 = vmatprep.subr.mxu0 0.0
    %462 = vmatpush1.msra.mxu0 0.0
    %463 = vmatprep.subr.mxu0 0.0
    %464 = vmatpush1.msra.mxu0 0.0
    %465 = vmatprep.mubr.f32.mxu0 0.0
    %466 = vmatmul.mubr.f32.gmra.mrb[0].mxu0 %v399
    %v467 = vpop.f32.mrb[0].mxu0
    %v468 = vadd.f32 %v177, %v467
    %v469 = vpop.f32.mrb[0].mxu0
    %470 = vdwg.mxu0
    %v471 = vld [vmem:[%s4] sm:$0xff]
    %v472 = vld [vmem:[%s4 + $0x8] sm:$0xff]
    %v473 = vld [vmem:[%s4 + $0x10] sm:$0xff]
    %v474 = vld [vmem:[%s4 + $0x18] sm:$0xff]
    %v475 = vld [vmem:[%s4 + $0x20] sm:$0x1]
    %v476 = vlaneseq
    %v477 = vshrl.u32 %v476, 7
    %v478 = vsub.s32 0, %v477
    %v479 = vrot.slane %v475, %v478
    %481 = vrot.lane.b32.xlu0 %v164, 96
    %v482 = vpop.permute.xlu0 %481
    %v483 = vsel %vm178, %v482, 0
    %485 = vmatprep.subr.mxu0 0.0
    %486 = vmatpush1.msra.mxu0 %v471
    %487 = vmatprep.subr.mxu0 0.0
    %488 = vmatpush1.msra.mxu0 %v472
    %489 = vmatprep.subr.mxu0 0.0
    %490 = vmatpush1.msra.mxu0 %v473
    %491 = vmatprep.subr.mxu0 0.0
    %492 = vmatpush1.msra.mxu0 %v474
    %493 = vmatprep.subr.mxu0 0.0
    %494 = vmatpush1.msra.mxu0 0.0
    %495 = vmatprep.subr.mxu0 0.0
    %496 = vmatpush1.msra.mxu0 0.0
    %497 = vmatprep.subr.mxu0 0.0
    %498 = vmatpush1.msra.mxu0 0.0
    %499 = vmatprep.subr.mxu0 0.0
    %500 = vmatpush1.msra.mxu0 0.0
    %501 = vmatprep.subr.mxu0 0.0
    %502 = vmatpush1.msra.mxu0 0.0
    %503 = vmatprep.subr.mxu0 0.0
    %504 = vmatpush1.msra.mxu0 0.0
    %505 = vmatprep.subr.mxu0 0.0
    %506 = vmatpush1.msra.mxu0 0.0
    %507 = vmatprep.subr.mxu0 0.0
    %508 = vmatpush1.msra.mxu0 0.0
    %509 = vmatprep.subr.mxu0 0.0
    %510 = vmatpush1.msra.mxu0 0.0
    %511 = vmatprep.subr.mxu0 0.0
    %512 = vmatpush1.msra.mxu0 0.0
    %513 = vmatprep.subr.mxu0 0.0
    %514 = vmatpush1.msra.mxu0 0.0
    %515 = vmatprep.subr.mxu0 0.0
    %516 = vmatpush1.msra.mxu0 0.0
    %517 = vmatprep.subr.mxu0 0.0
    %518 = vmatpush1.msra.mxu0 0.0
    %519 = vmatprep.subr.mxu0 0.0
    %520 = vmatpush1.msra.mxu0 0.0
    %521 = vmatprep.subr.mxu0 0.0
    %522 = vmatpush1.msra.mxu0 0.0
    %523 = vmatprep.subr.mxu0 0.0
    %524 = vmatpush1.msra.mxu0 0.0
    %525 = vmatprep.subr.mxu0 0.0
    %526 = vmatpush1.msra.mxu0 0.0
    %527 = vmatprep.subr.mxu0 0.0
    %528 = vmatpush1.msra.mxu0 0.0
    %529 = vmatprep.subr.mxu0 0.0
    %530 = vmatpush1.msra.mxu0 0.0
    %531 = vmatprep.subr.mxu0 0.0
    %532 = vmatpush1.msra.mxu0 0.0
    %533 = vmatprep.subr.mxu0 0.0
    %534 = vmatpush1.msra.mxu0 0.0
    %535 = vmatprep.subr.mxu0 0.0
    %536 = vmatpush1.msra.mxu0 0.0
    %537 = vmatprep.subr.mxu0 0.0
    %538 = vmatpush1.msra.mxu0 0.0
    %539 = vmatprep.subr.mxu0 0.0
    %540 = vmatpush1.msra.mxu0 0.0
    %541 = vmatprep.subr.mxu0 0.0
    %542 = vmatpush1.msra.mxu0 0.0
    %543 = vmatprep.subr.mxu0 0.0
    %544 = vmatpush1.msra.mxu0 0.0
    %545 = vmatprep.subr.mxu0 0.0
    %546 = vmatpush1.msra.mxu0 0.0
    %547 = vmatprep.subr.mxu0 0.0
    %548 = vmatpush1.msra.mxu0 0.0
    %549 = vmatprep.mubr.f32.mxu0 0.0
    %550 = vmatmul.mubr.f32.gmra.mrb[0].mxu0 %v483
    %v551 = vpop.f32.mrb[0].mxu0
    %v552 = vadd.f32 %v479, %v551
    %v553 = vpop.f32.mrb[0].mxu0
    %554 = vdwg.mxu0
    %v557 = vunpack.c.l.s4 1966171168
    %v558 = vunpack.c.0.s8 %v557
    %v559 = vlaneseq
    %v560 = vshrl.u32 %v559, 7
    %v561 = vsub.s32 %v558, %v560
    %v562 = vrot.slane %v552, %v561
    %v563 = vcombine.high %v562, %v562
    %v565 = vunpack.c.l.s4 1966171168
    %v566 = vunpack.c.0.s8 %v565
    %v567 = vlaneseq
    %v568 = vshrl.u32 %v567, 7
    %v569 = vsub.s32 %v566, %v568
    %v570 = vrot.slane %v562, %v569
    %v572 = vunpack.c.l.s4 1966171168
    %v573 = vunpack.c.0.s8 %v572
    %v574 = vlaneseq
    %v575 = vshrl.u32 %v574, 7
    %v576 = vsub.s32 %v573, %v575
    %v577 = vrot.slane %v563, %v576
    %v578 = vcombine.high %v570, %v570
    %v579 = vcombine.high %v577, %v577
    %v580 = vlaneseq
    %v581 = vshrl.u32 %v580, 7
    %v582 = vsub.s32 0, %v581
    %v583 = vrot.slane %v570, %v582
    %v584 = vlaneseq
    %v585 = vshrl.u32 %v584, 7
    %v586 = vsub.s32 0, %v585
    %v587 = vrot.slane %v577, %v586
    %v588 = vlaneseq
    %v589 = vshrl.u32 %v588, 7
    %v590 = vsub.s32 0, %v589
    %v591 = vrot.slane %v578, %v590
    %v592 = vlaneseq
    %v593 = vshrl.u32 %v592, 7
    %v594 = vsub.s32 0, %v593
    %v595 = vrot.slane %v579, %v594
    %v600 = vadd.f32 %v249, %v583
    %v601 = vadd.f32 %v322, %v587
    %v602 = vadd.f32 %v395, %v591
    %v603 = vadd.f32 %v468, %v595
    %v604 = vtanh.pop %v600
    %v605 = vtanh.pop %v601
    %v606 = vtanh.pop %v602
    %v607 = vtanh.pop %v603
    %v608 = vld [vmem:[#allocation2] sm:$0x1]
    %v610 = vlaneseq
    %v611 = vshrl.u32 %v610, 7
    %v612 = vsub.s32 0, %v611
    %v613 = vrot.slane %v608, %v612
    %v615 = vmul.f32 %v604, %v613
    %v616 = vmul.f32 %v605, %v613
    %v617 = vmul.f32 %v606, %v613
    %v618 = vmul.f32 %v607, %v613
    %v619 = vsel %vm178, %v615, 0.0
    %620 = vadd.xlane.f32.xlu0 %v619
    %v621 = vpop.xlane.xlu0 %620
    %v622 = vsel %vm178, %v616, 0.0
    %623 = vadd.xlane.f32.xlu0 %v622
    %v624 = vpop.xlane.xlu0 %623
    %v625 = vsel %vm178, %v617, 0.0
    %626 = vadd.xlane.f32.xlu0 %v625
    %v627 = vpop.xlane.xlu0 %626
    %v628 = vsel %vm178, %v618, 0.0
    %629 = vadd.xlane.f32.xlu0 %v628
    %v630 = vpop.xlane.xlu0 %629
    %v635 = vlaneseq
    %v636 = vand.u32 %v635, 127
    %v637 = vlaneseq
    %v638 = vshrl.u32 %v637, 7
    %v639 = vsub.s32 %v636, %v638
    %v640 = vrot.slane %v621, %v639
    %v641 = vlaneseq
    %v642 = vshrl.u32 %v641, 7
    %v643 = vsub.s32 %v636, %v642
    %v644 = vrot.slane %v624, %v643
    %v645 = vlaneseq
    %v646 = vshrl.u32 %v645, 7
    %v647 = vsub.s32 %v636, %v646
    %v648 = vrot.slane %v627, %v647
    %v649 = vlaneseq
    %v650 = vshrl.u32 %v649, 7
    %v651 = vsub.s32 %v636, %v650
    %v652 = vrot.slane %v630, %v651
    %vm653 = vcmask 1041409
    %v654 = vsel %vm653, %v644, %v640
    %vm655 = vcmask 1042434
    %v656 = vsel %vm655, %v648, %v654
    %vm657 = vcmask 1043459
    %v658 = vsel %vm657, %v652, %v656
    %vm660 = vcmask 60416
    %v661 = vsel %vm660, %v658, -inf
    %662 = vmax.xlane.f32.xlu0 %v661
    %v663 = vpop.xlane.xlu0 %662
    %v665 = vlaneseq
    %v666 = vshrl.u32 %v665, 7
    %v667 = vsub.s32 0, %v666
    %v668 = vrot.slane %v663, %v667
    %v669 = vlaneseq
    %v670 = vshrl.u32 %v669, 7
    %v671 = vsub.s32 1, %v670
    %v672 = vrot.slane %v663, %v671
    %v673 = vlaneseq
    %v674 = vshrl.u32 %v673, 7
    %v675 = vsub.s32 2, %v674
    %v676 = vrot.slane %v663, %v675
    %v677 = vlaneseq
    %v678 = vshrl.u32 %v677, 7
    %v679 = vsub.s32 3, %v678
    %v680 = vrot.slane %v663, %v679
    %v685 = vsub.f32 %v621, %v668
    %v686 = vsub.f32 %v624, %v672
    %v687 = vsub.f32 %v627, %v676
    %v688 = vsub.f32 %v630, %v680
    %v689 = vmul.f32 %v685, 1.442695
    %v690 = vpow.pop %v689
    %v691 = vmul.f32 %v686, 1.442695
    %v692 = vpow.pop %v691
    %v693 = vmul.f32 %v687, 1.442695
    %v694 = vpow.pop %v693
    %v695 = vmul.f32 %v688, 1.442695
    %v696 = vpow.pop %v695
    %701 = vset.pattern.permute.xlu0 0
    %702 = vperm.xlu0 %701, %v690
    %v703 = vpop.permute.xlu0 %702
    %704 = vset.pattern.permute.xlu0 0
    %705 = vperm.xlu0 %704, %v692
    %v706 = vpop.permute.xlu0 %705
    %707 = vset.pattern.permute.xlu0 0
    %708 = vperm.xlu0 %707, %v694
    %v709 = vpop.permute.xlu0 %708
    %710 = vset.pattern.permute.xlu0 0
    %711 = vperm.xlu0 %710, %v696
    %v712 = vpop.permute.xlu0 %711
    %v713 = vlaneseq
    %v714 = vshrl.u32 %v713, 7
    %v715 = vsub.s32 %v636, %v714
    %v716 = vrot.slane %v703, %v715
    %v717 = vlaneseq
    %v718 = vshrl.u32 %v717, 7
    %v719 = vsub.s32 %v636, %v718
    %v720 = vrot.slane %v706, %v719
    %v721 = vlaneseq
    %v722 = vshrl.u32 %v721, 7
    %v723 = vsub.s32 %v636, %v722
    %v724 = vrot.slane %v709, %v723
    %v725 = vlaneseq
    %v726 = vshrl.u32 %v725, 7
    %v727 = vsub.s32 %v636, %v726
    %v728 = vrot.slane %v712, %v727
    %v729 = vsel %vm653, %v720, %v716
    %v730 = vsel %vm655, %v724, %v729
    %v731 = vsel %vm657, %v728, %v730
    %v733 = vsel %vm660, %v731, 0.0
    %734 = vadd.xlane.f32.xlu0 %v733
    %v735 = vpop.xlane.xlu0 %734
    %v737 = vlaneseq
    %v738 = vshrl.u32 %v737, 7
    %v739 = vsub.s32 0, %v738
    %v740 = vrot.slane %v735, %v739
    %v741 = vlaneseq
    %v742 = vshrl.u32 %v741, 7
    %v743 = vsub.s32 1, %v742
    %v744 = vrot.slane %v735, %v743
    %v745 = vlaneseq
    %v746 = vshrl.u32 %v745, 7
    %v747 = vsub.s32 2, %v746
    %v748 = vrot.slane %v735, %v747
    %v749 = vlaneseq
    %v750 = vshrl.u32 %v749, 7
    %v751 = vsub.s32 3, %v750
    %v752 = vrot.slane %v735, %v751
    %v757 = vrcp.pop %v740
    %v758 = vmul.f32 %v690, %v757
    %v759 = vrcp.pop %v744
    %v760 = vmul.f32 %v692, %v759
    %v761 = vrcp.pop %v748
    %v762 = vmul.f32 %v694, %v761
    %v763 = vrcp.pop %v752
    %v764 = vmul.f32 %v696, %v763
    %766 = vset.pattern.permute.xlu0 0
    %767 = vperm.xlu0 %766, %v758
    %v768 = vpop.permute.xlu0 %767
    %771 = vset.pattern.permute.xlu0 0
    %772 = vperm.xlu0 %771, %v760
    %v773 = vpop.permute.xlu0 %772
    %776 = vset.pattern.permute.xlu0 0
    %777 = vperm.xlu0 %776, %v762
    %v778 = vpop.permute.xlu0 %777
    %781 = vset.pattern.permute.xlu0 0
    %782 = vperm.xlu0 %781, %v764
    %v783 = vpop.permute.xlu0 %782
    %v785 = vmul.f32 %v768, %v249
    %v786 = vmul.f32 %v773, %v322
    %v787 = vmul.f32 %v778, %v395
    %v788 = vmul.f32 %v783, %v468
    %vm789 = vcmask 523520
    %v790 = vsel %vm789, %v785, 0.0
    %v791 = vrot.slane %v790, 4
    %v792 = vadd.f32 %v790, %v791
    %v793 = vrot.slane %v792, 2
    %v794 = vadd.f32 %v792, %v793
    %v795 = vrot.slane %v794, 1
    %v796 = vadd.f32 %v794, %v795
    %v797 = vsel %vm789, %v786, 0.0
    %v798 = vrot.slane %v797, 4
    %v799 = vadd.f32 %v797, %v798
    %v800 = vrot.slane %v799, 2
    %v801 = vadd.f32 %v799, %v800
    %v802 = vrot.slane %v801, 1
    %v803 = vadd.f32 %v801, %v802
    %v804 = vsel %vm789, %v787, 0.0
    %v805 = vrot.slane %v804, 4
    %v806 = vadd.f32 %v804, %v805
    %v807 = vrot.slane %v806, 2
    %v808 = vadd.f32 %v806, %v807
    %v809 = vrot.slane %v808, 1
    %v810 = vadd.f32 %v808, %v809
    %v811 = vsel %vm789, %v788, 0.0
    %v812 = vrot.slane %v811, 4
    %v813 = vadd.f32 %v811, %v812
    %v814 = vrot.slane %v813, 2
    %v815 = vadd.f32 %v813, %v814
    %v816 = vrot.slane %v815, 1
    %v817 = vadd.f32 %v815, %v816
    %v822 = vsel %vm653, %v803, %v796
    %v823 = vsel %vm655, %v810, %v822
    %v824 = vsel %vm657, %v817, %v823
    %v826 = vadd.f32 %v552, %v824
    %v827 = vmax.f32 %v826, 0.0
    %v828 = vld [vmem:[#allocation4] sm:$0xff]
    %v829 = vld [vmem:[#allocation4 + $0x8] sm:$0xff]
    %v830 = vld [vmem:[#allocation4 + $0x10] sm:$0xff]
    %v831 = vld [vmem:[#allocation4 + $0x18] sm:$0xff]
    %v832 = vld [vmem:[#allocation4 + $0x20] sm:$0x1]
    %v833 = vlaneseq
    %v834 = vshrl.u32 %v833, 7
    %v835 = vsub.s32 0, %v834
    %v836 = vrot.slane %v832, %v835
    %838 = vrot.lane.b32.xlu0 %v827, 96
    %v839 = vpop.permute.xlu0 %838
    %v840 = vsel %vm178, %v839, 0
    %842 = vmatprep.subr.mxu0 0.0
    %843 = vmatpush1.msra.mxu0 %v828
    %844 = vmatprep.subr.mxu0 0.0
    %845 = vmatpush1.msra.mxu0 %v829
    %846 = vmatprep.subr.mxu0 0.0
    %847 = vmatpush1.msra.mxu0 %v830
    %848 = vmatprep.subr.mxu0 0.0
    %849 = vmatpush1.msra.mxu0 %v831
    %850 = vmatprep.subr.mxu0 0.0
    %851 = vmatpush1.msra.mxu0 0.0
    %852 = vmatprep.subr.mxu0 0.0
    %853 = vmatpush1.msra.mxu0 0.0
    %854 = vmatprep.subr.mxu0 0.0
    %855 = vmatpush1.msra.mxu0 0.0
    %856 = vmatprep.subr.mxu0 0.0
    %857 = vmatpush1.msra.mxu0 0.0
    %858 = vmatprep.subr.mxu0 0.0
    %859 = vmatpush1.msra.mxu0 0.0
    %860 = vmatprep.subr.mxu0 0.0
    %861 = vmatpush1.msra.mxu0 0.0
    %862 = vmatprep.subr.mxu0 0.0
    %863 = vmatpush1.msra.mxu0 0.0
    %864 = vmatprep.subr.mxu0 0.0
    %865 = vmatpush1.msra.mxu0 0.0
    %866 = vmatprep.subr.mxu0 0.0
    %867 = vmatpush1.msra.mxu0 0.0
    %868 = vmatprep.subr.mxu0 0.0
    %869 = vmatpush1.msra.mxu0 0.0
    %870 = vmatprep.subr.mxu0 0.0
    %871 = vmatpush1.msra.mxu0 0.0
    %872 = vmatprep.subr.mxu0 0.0
    %873 = vmatpush1.msra.mxu0 0.0
    %874 = vmatprep.subr.mxu0 0.0
    %875 = vmatpush1.msra.mxu0 0.0
    %876 = vmatprep.subr.mxu0 0.0
    %877 = vmatpush1.msra.mxu0 0.0
    %878 = vmatprep.subr.mxu0 0.0
    %879 = vmatpush1.msra.mxu0 0.0
    %880 = vmatprep.subr.mxu0 0.0
    %881 = vmatpush1.msra.mxu0 0.0
    %882 = vmatprep.subr.mxu0 0.0
    %883 = vmatpush1.msra.mxu0 0.0
    %884 = vmatprep.subr.mxu0 0.0
    %885 = vmatpush1.msra.mxu0 0.0
    %886 = vmatprep.subr.mxu0 0.0
    %887 = vmatpush1.msra.mxu0 0.0
    %888 = vmatprep.subr.mxu0 0.0
    %889 = vmatpush1.msra.mxu0 0.0
    %890 = vmatprep.subr.mxu0 0.0
    %891 = vmatpush1.msra.mxu0 0.0
    %892 = vmatprep.subr.mxu0 0.0
    %893 = vmatpush1.msra.mxu0 0.0
    %894 = vmatprep.subr.mxu0 0.0
    %895 = vmatpush1.msra.mxu0 0.0
    %896 = vmatprep.subr.mxu0 0.0
    %897 = vmatpush1.msra.mxu0 0.0
    %898 = vmatprep.subr.mxu0 0.0
    %899 = vmatpush1.msra.mxu0 0.0
    %900 = vmatprep.subr.mxu0 0.0
    %901 = vmatpush1.msra.mxu0 0.0
    %902 = vmatprep.subr.mxu0 0.0
    %903 = vmatpush1.msra.mxu0 0.0
    %904 = vmatprep.subr.mxu0 0.0
    %905 = vmatpush1.msra.mxu0 0.0
    %906 = vmatprep.mubr.f32.mxu0 0.0
    %907 = vmatmul.mubr.f32.gmra.mrb[0].mxu0 %v840
    %v908 = vpop.f32.mrb[0].mxu0
    %v909 = vadd.f32 %v836, %v908
    %v910 = vpop.f32.mrb[0].mxu0
    %911 = vdwg.mxu0
    %vm912 = vcmask 519168
    %v913 = vsel %vm912, %v909, -inf
    %914 = vmax.xlane.f32.xlu0 %v913
    %v915 = vpop.xlane.xlu0 %914
    %v916 = vsub.f32 %v909, %v915
    %v917 = vmul.f32 %v916, 1.442695
    %v918 = vpow.pop %v917
    %v919 = vsel %vm912, %v918, 0.0
    %920 = vadd.xlane.f32.xlu0 %v919
    %v921 = vpop.xlane.xlu0 %920
    %v922 = vlog2.pop %v921
    %v923 = vmul.f32 %v922, 0.6931472
    %v924 = vsub.f32 %v916, %v923
    %925 = vrot.lane.b32.xlu0 %v164, 32
    %v926 = vpop.permute.xlu0 %925
    %v928 = vadd.s32 %v636, 4294967200
    %v929 = vlaneseq
    %v930 = vshrl.u32 %v929, 7
    %v931 = vsub.s32 %v928, %v930
    %v932 = vrot.slane %v768, %v931
    %v933 = vlaneseq
    %v934 = vshrl.u32 %v933, 7
    %v935 = vsub.s32 %v928, %v934
    %v936 = vrot.slane %v773, %v935
    %v937 = vlaneseq
    %v938 = vshrl.u32 %v937, 7
    %v939 = vsub.s32 %v928, %v938
    %v940 = vrot.slane %v778, %v939
    %v941 = vlaneseq
    %v942 = vshrl.u32 %v941, 7
    %v943 = vsub.s32 %v928, %v942
    %v944 = vrot.slane %v783, %v943
    %v945 = vsel %vm653, %v936, %v932
    %v946 = vsel %vm655, %v940, %v945
    %v947 = vsel %vm657, %v944, %v946
    %v949 = vsel %vm66, %v924, %v926
    %vm950 = vcmask 785408
    %v951 = vsel %vm950, %v949, %v947
    %vm952 = vcmask 850944
    %v953 = vsel %vm952, %v951, 0.0
    %954 = vst [vmem:[%s7] sm:$0xf] %v953
    // Predicated region
    $region38: #{_decoder_step.1} parent=1 // pred_check
      _
    $region39: #{_decoder_step.1} parent=1 // pred_check_branch
      %956 = sbr.rel (0) target = $region41
    $region40: #{_decoder_step.1} parent=1 // pred_region
      _
    $region41: #{_decoder_step.1} parent=1 // pred_fallthru
      _
    // Predicated region
    $region42: #{_decoder_step.1} parent=1 // pred_check
      _
    $region43: #{_decoder_step.1} parent=1 // pred_check_branch
      %958 = sbr.rel (0) target = $region45
    $region44: #{_decoder_step.1} parent=1 // pred_region
      _
    $region45: #{_decoder_step.1} parent=1 // pred_fallthru
      _
    %959 = vsyncpa [#allocation3], 1
    %960 = vsyncpa [#allocation5], 1

</llo_original>
